<compile_context>
chip_gen: v7x
topology: tpu7x:2x2x1
jax: 0.10.0
libtpu: 0.0.40
codegen_flags: <defaults>
</compile_context>

<pallas_src>
import functools
import math

import jax
import jax.numpy as jnp
from jax import lax
from jax.experimental import pallas as pl
from jax.experimental.pallas import tpu as pltpu


def _debiased_kernel(zi_ref, zj_ref, out_ref, zi_n, neg_acc, pos_acc, *,
                     batch_size: int, temperature: float, tau_plus: float):
    ib = pl.program_id(0)
    jb = pl.program_id(1)
    nj = pl.num_programs(1)          # number of column blocks = 2B / T
    nb_half = nj // 2                # blocks per half (q-half / k-half)
    inv_t = 1.0 / temperature

    # New row block: normalize the row tile once (cached across the column
    # sweep) and reset the accumulators.
    @pl.when(jb == 0)
    def _():
        zi = zi_ref[...].astype(jnp.float32)
        ss = jnp.sum(zi * zi, axis=1, keepdims=True)
        zi_n[...] = zi * lax.rsqrt(jnp.maximum(ss, 1e-16))
        neg_acc[...] = jnp.zeros_like(neg_acc)
        pos_acc[...] = jnp.zeros_like(pos_acc)

    # Normalize the column tile (cheap: O(T*D) VPU + T rsqrt on EUP).
    zj = zj_ref[...].astype(jnp.float32)
    ssj = jnp.sum(zj * zj, axis=1, keepdims=True)
    zj_n = zj * lax.rsqrt(jnp.maximum(ssj, 1e-16))
    zi = zi_n[...]                   # (T, D) normalized rows, row block ib

    # Gram block on the MXU; contract dim 1 of both operands (no transpose).
    g = lax.dot_general(zi, zj_n, dimension_numbers=(((1,), (1,)), ((), ())),
                        preferred_element_type=jnp.float32)      # (T, T)
    e = jnp.exp(g * inv_t)
    neg_acc[...] += jnp.sum(e, axis=1, keepdims=True)

    # Excluded columns for global row i are i (self) and (i + B) mod 2B
    # (positive pair).  With T | B these sit on the local diagonal of the
    # "self" block (jb == ib) and of the "partner" block
    # (jb == (ib + B/T) mod 2B/T), and equal row-wise dot products of the tiles.
    is_self = jb == ib
    is_partner = jb == (ib + nb_half) % nj

    @pl.when(jnp.logical_or(is_self, is_partner))
    def _():
        d = jnp.exp(jnp.sum(zi * zj_n, axis=1, keepdims=True) * inv_t)  # (T, 1)
        neg_acc[...] -= d

        @pl.when(is_partner)
        def _():
            pos_acc[...] += d        # exp(cos(q_i, k_i) / t)

    @pl.when(jb == nj - 1)
    def _():
        pos = pos_acc[...]
        neg = neg_acc[...]
        n_f = 2.0 * (batch_size - 1)
        ng = (-tau_plus * n_f * pos + neg) / (1.0 - tau_plus)
        ng = jnp.maximum(ng, n_f * math.exp(-1.0 / temperature))
        out_ref[...] = -jnp.log(pos / (pos + ng))


def debiased_loss(q, k, temperature, tau_plus, projected_q=None, projected_k=None,
                  predicted_q=None, predicted_k=None, m=None):
    """Pallas implementation of Debiased.forward (m=None path)."""
    if projected_q is not None and projected_k is not None:
        q, k = projected_q, projected_k
    del predicted_q, predicted_k
    if m is not None:
        # TODO(synk): the m-augmented negative columns (similarity(z, m)) are not implemented.
        raise NotImplementedError("m-augmented negatives are not supported")

    B, D = q.shape
    z = jnp.concatenate([q, k], axis=0).astype(jnp.float32)      # (2B, D)

    # Row tile of the (2B, 2B) pairwise matrix; must divide B so the excluded
    # (self / positive) columns fall on block-local diagonals.  256 matches the
    # v6e/v7x MXU, 128 the v5e MXU; small batches fall back to the 8-sublane min.
    tile = next((t for t in (256, 128, 64, 32, 16, 8) if B % t == 0), None)
    assert tile is not None, "batch size must be a multiple of 8"
    n_blk = (2 * B) // tile

    kernel = functools.partial(_debiased_kernel, batch_size=B,
                               temperature=float(temperature),
                               tau_plus=float(tau_plus))
    row_loss = pl.pallas_call(
        kernel,
        out_shape=jax.ShapeDtypeStruct((2 * B, 1), jnp.float32),
        grid_spec=pltpu.PrefetchScalarGridSpec(
            num_scalar_prefetch=0,
            grid=(n_blk, n_blk),
            in_specs=[pl.BlockSpec((tile, D), lambda i, j: (i, 0)),   # row tile
                      pl.BlockSpec((tile, D), lambda i, j: (j, 0))],  # col tile
            out_specs=pl.BlockSpec((tile, 1), lambda i, j: (i, 0)),
            scratch_shapes=[pltpu.VMEM((tile, D), jnp.float32),   # normalized row tile
                            pltpu.VMEM((tile, 1), jnp.float32),   # neg row-sum acc
                            pltpu.VMEM((tile, 1), jnp.float32)]), # pos acc
        compiler_params=pltpu.CompilerParams(
            dimension_semantics=("parallel", "arbitrary"),
            vmem_limit_bytes=32 << 20),
    )(z, z)

    return jnp.mean(row_loss)


def _reference(q, k, temperature, tau_plus):
    """Pure-JAX reference mirroring the PyTorch semantics."""
    B = q.shape[0]
    z = jnp.concatenate([q, k], axis=0)

    def cos(x, y):   # torch.nn.CosineSimilarity(dim=-1), eps=1e-8
        num = jnp.sum(x * y, axis=-1)
        den = jnp.maximum(jnp.linalg.norm(x, axis=-1) * jnp.linalg.norm(y, axis=-1), 1e-8)
        return num / den

    sim = cos(z[:, None, :], z[None, :, :]) / temperature
    neg = jnp.exp(sim)
    mask = jnp.tile(~jnp.eye(B, dtype=bool), (2, 2))
    neg_sum = jnp.sum(jnp.where(mask, neg, 0.0), axis=-1)

    pos = jnp.exp(cos(q, k) / temperature)
    pos = jnp.concatenate([pos, pos], axis=0)

    n = 2 * (B - 1)
    ng = (-tau_plus * n * pos + neg_sum) / (1.0 - tau_plus)
    ng = jnp.maximum(ng, n * math.e ** (-1.0 / temperature))
    return jnp.mean(-jnp.log(pos / (pos + ng)))


if __name__ == "__main__":
    B, D = 8, 32
    temperature, tau_plus = 0.5, 0.1

    key = jax.random.PRNGKey(0)
    kq, kk = jax.random.split(key)
    q = jax.random.normal(kq, (B, D), dtype=jnp.float32)
    k = jax.random.normal(kk, (B, D), dtype=jnp.float32)

    loss = debiased_loss(q, k, temperature, tau_plus)
    loss = jax.block_until_ready(loss)

    ref = jax.block_until_ready(_reference(q, k, temperature, tau_plus))
    assert jnp.allclose(loss, ref, rtol=1e-5, atol=1e-5), (loss, ref)

    print("KERNEL_OK")
</pallas_src>

<mosaic_0001>
module attributes {stable_mosaic.version = 11 : i64} {
  func.func @_debiased_kernel(%arg0: i32, %arg1: i32, %arg2: memref<8x32xf32, #tpu.memory_space<vmem>>, %arg3: memref<8x32xf32, #tpu.memory_space<vmem>>, %arg4: memref<8x1xf32, #tpu.memory_space<vmem>>, %arg5: memref<8x32xf32, #tpu.memory_space<vmem>>, %arg6: memref<8x1xf32, #tpu.memory_space<vmem>>, %arg7: memref<8x1xf32, #tpu.memory_space<vmem>>) attributes {dimension_semantics = [#tpu.dimension_semantics<parallel>, #tpu.dimension_semantics<arbitrary>], iteration_bounds = array<i64: 2, 2>, scalar_prefetch = 0 : i64, scratch_operands = 3 : i64, tpu.core_type = #tpu.core_type<tc>, window_params = [{transform_indices = @transform_0, window_bounds = array<i64: 8, 32>}, {transform_indices = @transform_1, window_bounds = array<i64: 8, 32>}, {transform_indices = @transform_2, window_bounds = array<i64: 8, 1>}]} {
    %c0_i32 = arith.constant 0 : i32
    %0 = arith.cmpi eq, %arg1, %c0_i32 : i32
    %1 = arith.extui %0 : i1 to i32
    %c0_i32_0 = arith.constant 0 : i32
    %2 = arith.cmpi ne, %1, %c0_i32_0 : i32
    scf.if %2 {
      %c0_20 = arith.constant 0 : index
      %c0_21 = arith.constant 0 : index
      %41 = vector.load %arg2[%c0_20, %c0_21] : memref<8x32xf32, #tpu.memory_space<vmem>>, vector<8x32xf32>
      %42 = arith.mulf %41, %41 : vector<8x32xf32>
      %cst_22 = arith.constant dense<0.000000e+00> : vector<8xf32>
      %43 = vector.multi_reduction <add>, %42, %cst_22 [1] : vector<8x32xf32> to vector<8xf32>
      %44 = vector.shape_cast %43 : vector<8xf32> to vector<8x1xf32>
      %cst_23 = arith.constant 1.000000e-16 : f32
      %45 = vector.broadcast %cst_23 : f32 to vector<8x1xf32>
      %46 = arith.maximumf %44, %45 : vector<8x1xf32>
      %47 = math.rsqrt %46 : vector<8x1xf32>
      %48 = vector.broadcast %47 : vector<8x1xf32> to vector<8x32xf32>
      %49 = arith.mulf %41, %48 : vector<8x32xf32>
      %c0_24 = arith.constant 0 : index
      %c0_25 = arith.constant 0 : index
      %50 = vector.load %arg5[%c0_24, %c0_25] : memref<8x32xf32, #tpu.memory_space<vmem>>, vector<8x32xf32>
      tpu.vector_store %arg5[%c0_24, %c0_25], %49 {strides = array<i32>} : memref<8x32xf32, #tpu.memory_space<vmem>>, vector<8x32xf32>,
      %cst_26 = arith.constant 0.000000e+00 : f32
      %51 = vector.broadcast %cst_26 : f32 to vector<8x1xf32>
      %c0_27 = arith.constant 0 : index
      %c0_28 = arith.constant 0 : index
      %52 = vector.load %arg6[%c0_27, %c0_28] : memref<8x1xf32, #tpu.memory_space<vmem>>, vector<8x1xf32>
      tpu.vector_store %arg6[%c0_27, %c0_28], %51 {strides = array<i32>} : memref<8x1xf32, #tpu.memory_space<vmem>>, vector<8x1xf32>,
      %cst_29 = arith.constant 0.000000e+00 : f32
      %53 = vector.broadcast %cst_29 : f32 to vector<8x1xf32>
      %c0_30 = arith.constant 0 : index
      %c0_31 = arith.constant 0 : index
      %54 = vector.load %arg7[%c0_30, %c0_31] : memref<8x1xf32, #tpu.memory_space<vmem>>, vector<8x1xf32>
      tpu.vector_store %arg7[%c0_30, %c0_31], %53 {strides = array<i32>} : memref<8x1xf32, #tpu.memory_space<vmem>>, vector<8x1xf32>,
    } else {
    }
    %c0 = arith.constant 0 : index
    %c0_1 = arith.constant 0 : index
    %3 = vector.load %arg3[%c0, %c0_1] : memref<8x32xf32, #tpu.memory_space<vmem>>, vector<8x32xf32>
    %4 = arith.mulf %3, %3 : vector<8x32xf32>
    %cst = arith.constant dense<0.000000e+00> : vector<8xf32>
    %5 = vector.multi_reduction <add>, %4, %cst [1] : vector<8x32xf32> to vector<8xf32>
    %6 = vector.shape_cast %5 : vector<8xf32> to vector<8x1xf32>
    %cst_2 = arith.constant 1.000000e-16 : f32
    %7 = vector.broadcast %cst_2 : f32 to vector<8x1xf32>
    %8 = arith.maximumf %6, %7 : vector<8x1xf32>
    %9 = math.rsqrt %8 : vector<8x1xf32>
    %10 = vector.broadcast %9 : vector<8x1xf32> to vector<8x32xf32>
    %11 = arith.mulf %3, %10 : vector<8x32xf32>
    %c0_3 = arith.constant 0 : index
    %c0_4 = arith.constant 0 : index
    %12 = vector.load %arg5[%c0_3, %c0_4] : memref<8x32xf32, #tpu.memory_space<vmem>>, vector<8x32xf32>
    %cst_5 = arith.constant dense<0.000000e+00> : vector<8x8xf32>
    %13 = tpu.matmul %12, %11, %cst_5 {dimension_numbers = #tpu.dot_dimension_numbers<[1], [1], [0], [0], [0, 0, 1, 0], [], []>} : vector<8x32xf32>, vector<8x32xf32>, vector<8x8xf32> -> vector<8x8xf32>
    %cst_6 = arith.constant 2.000000e+00 : f32
    %14 = vector.broadcast %cst_6 : f32 to vector<8x8xf32>
    %15 = arith.mulf %13, %14 : vector<8x8xf32>
    %16 = math.exp %15 : vector<8x8xf32>
    %c0_7 = arith.constant 0 : index
    %c0_8 = arith.constant 0 : index
    %17 = vector.load %arg6[%c0_7, %c0_8] : memref<8x1xf32, #tpu.memory_space<vmem>>, vector<8x1xf32>
    %cst_9 = arith.constant dense<0.000000e+00> : vector<8xf32>
    %18 = vector.multi_reduction <add>, %16, %cst_9 [1] : vector<8x8xf32> to vector<8xf32>
    %19 = vector.shape_cast %18 : vector<8xf32> to vector<8x1xf32>
    %20 = arith.addf %17, %19 : vector<8x1xf32>
    %c0_10 = arith.constant 0 : index
    %c0_11 = arith.constant 0 : index
    %21 = vector.load %arg6[%c0_10, %c0_11] : memref<8x1xf32, #tpu.memory_space<vmem>>, vector<8x1xf32>
    tpu.vector_store %arg6[%c0_10, %c0_11], %20 {strides = array<i32>} : memref<8x1xf32, #tpu.memory_space<vmem>>, vector<8x1xf32>,
    %22 = arith.cmpi eq, %arg1, %arg0 : i32
    %c1_i32 = arith.constant 1 : i32
    %23 = arith.addi %arg0, %c1_i32 : i32
    %c2_i32 = arith.constant 2 : i32
    %c0_i32_12 = arith.constant 0 : i32
    %24 = arith.cmpi eq, %c2_i32, %c0_i32_12 : i32
    %c1_i32_13 = arith.constant 1 : i32
    %25 = arith.select %24, %c1_i32_13, %c2_i32 : i32
    %26 = arith.remsi %23, %25 : i32
    %c0_i32_14 = arith.constant 0 : i32
    %27 = arith.cmpi ne, %26, %c0_i32_14 : i32
    %c0_i32_15 = arith.constant 0 : i32
    %28 = arith.cmpi slt, %26, %c0_i32_15 : i32
    %c0_i32_16 = arith.constant 0 : i32
    %29 = arith.cmpi slt, %25, %c0_i32_16 : i32
    %30 = arith.xori %28, %29 : i1
    %31 = arith.andi %30, %27 : i1
    %32 = arith.addi %26, %25 : i32
    %33 = arith.select %31, %32, %26 : i32
    %34 = arith.cmpi eq, %arg1, %33 : i32
    %35 = arith.ori %22, %34 : i1
    %36 = arith.extui %35 : i1 to i32
    %c0_i32_17 = arith.constant 0 : i32
    %37 = arith.cmpi ne, %36, %c0_i32_17 : i32
    scf.if %37 {
      %41 = arith.mulf %12, %11 : vector<8x32xf32>
      %cst_20 = arith.constant dense<0.000000e+00> : vector<8xf32>
      %42 = vector.multi_reduction <add>, %41, %cst_20 [1] : vector<8x32xf32> to vector<8xf32>
      %43 = vector.shape_cast %42 : vector<8xf32> to vector<8x1xf32>
      %cst_21 = arith.constant 2.000000e+00 : f32
      %44 = vector.broadcast %cst_21 : f32 to vector<8x1xf32>
      %45 = arith.mulf %43, %44 : vector<8x1xf32>
      %46 = math.exp %45 : vector<8x1xf32>
      %c0_22 = arith.constant 0 : index
      %c0_23 = arith.constant 0 : index
      %47 = vector.load %arg6[%c0_22, %c0_23] : memref<8x1xf32, #tpu.memory_space<vmem>>, vector<8x1xf32>
      %48 = arith.subf %47, %46 : vector<8x1xf32>
      %c0_24 = arith.constant 0 : index
      %c0_25 = arith.constant 0 : index
      %49 = vector.load %arg6[%c0_24, %c0_25] : memref<8x1xf32, #tpu.memory_space<vmem>>, vector<8x1xf32>
      tpu.vector_store %arg6[%c0_24, %c0_25], %48 {strides = array<i32>} : memref<8x1xf32, #tpu.memory_space<vmem>>, vector<8x1xf32>,
      %50 = arith.extui %34 : i1 to i32
      %c0_i32_26 = arith.constant 0 : i32
      %51 = arith.cmpi ne, %50, %c0_i32_26 : i32
      scf.if %51 {
        %c0_27 = arith.constant 0 : index
        %c0_28 = arith.constant 0 : index
        %52 = vector.load %arg7[%c0_27, %c0_28] : memref<8x1xf32, #tpu.memory_space<vmem>>, vector<8x1xf32>
        %53 = arith.addf %52, %46 : vector<8x1xf32>
        %c0_29 = arith.constant 0 : index
        %c0_30 = arith.constant 0 : index
        %54 = vector.load %arg7[%c0_29, %c0_30] : memref<8x1xf32, #tpu.memory_space<vmem>>, vector<8x1xf32>
        tpu.vector_store %arg7[%c0_29, %c0_30], %53 {strides = array<i32>} : memref<8x1xf32, #tpu.memory_space<vmem>>, vector<8x1xf32>,
      } else {
      }
    } else {
    }
    %c1_i32_18 = arith.constant 1 : i32
    %38 = arith.cmpi eq, %arg1, %c1_i32_18 : i32
    %39 = arith.extui %38 : i1 to i32
    %c0_i32_19 = arith.constant 0 : i32
    %40 = arith.cmpi ne, %39, %c0_i32_19 : i32
    scf.if %40 {
      %c0_20 = arith.constant 0 : index
      %c0_21 = arith.constant 0 : index
      %41 = vector.load %arg7[%c0_20, %c0_21] : memref<8x1xf32, #tpu.memory_space<vmem>>, vector<8x1xf32>
      %c0_22 = arith.constant 0 : index
      %c0_23 = arith.constant 0 : index
      %42 = vector.load %arg6[%c0_22, %c0_23] : memref<8x1xf32, #tpu.memory_space<vmem>>, vector<8x1xf32>
      %cst_24 = arith.constant -1.400000e+00 : f32
      %43 = vector.broadcast %cst_24 : f32 to vector<8x1xf32>
      %44 = arith.mulf %43, %41 : vector<8x1xf32>
      %45 = arith.addf %44, %42 : vector<8x1xf32>
      %cst_25 = arith.constant 0.899999976 : f32
      %46 = vector.broadcast %cst_25 : f32 to vector<8x1xf32>
      %47 = arith.divf %45, %46 : vector<8x1xf32>
      %cst_26 = arith.constant 1.89469397 : f32
      %48 = vector.broadcast %cst_26 : f32 to vector<8x1xf32>
      %49 = arith.maximumf %47, %48 : vector<8x1xf32>
      %50 = arith.addf %41, %49 : vector<8x1xf32>
      %51 = arith.divf %41, %50 : vector<8x1xf32>
      %52 = math.log %51 : vector<8x1xf32>
      %cst_27 = arith.constant 0.000000e+00 : f32
      %53 = vector.broadcast %cst_27 : f32 to vector<8x1xf32>
      %54 = arith.subf %53, %52 : vector<8x1xf32>
      %c0_28 = arith.constant 0 : index
      %c0_29 = arith.constant 0 : index
      %55 = vector.load %arg4[%c0_28, %c0_29] : memref<8x1xf32, #tpu.memory_space<vmem>>, vector<8x1xf32>
      tpu.vector_store %arg4[%c0_28, %c0_29], %54 {strides = array<i32>} : memref<8x1xf32, #tpu.memory_space<vmem>>, vector<8x1xf32>,
    } else {
    }
    return
  }
  func.func @transform_0(%arg0: i32, %arg1: i32) -> (i32, i32) {
    %c0_i32 = arith.constant 0 : i32
    %c0_i32_0 = arith.constant 0 : i32
    return %arg0, %c0_i32 : i32, i32
  }
  func.func @transform_1(%arg0: i32, %arg1: i32) -> (i32, i32) {
    %c0_i32 = arith.constant 0 : i32
    %c0_i32_0 = arith.constant 0 : i32
    return %arg1, %c0_i32 : i32, i32
  }
  func.func @transform_2(%arg0: i32, %arg1: i32) -> (i32, i32) {
    %c0_i32 = arith.constant 0 : i32
    %c0_i32_0 = arith.constant 0 : i32
    return %arg0, %c0_i32 : i32, i32
  }
}

</mosaic_0001>

<llo_original>
// kernel: tpu_custom_call.1
$region0: #{tpu_custom_call.1}
  #allocation0 [shape = 'u32[]', space=smem, size = 0x4, offset = 0x4, fixed_abs, tag = 'smem constant byte address 0x4 - core index']
  #allocation1 [shape = 'u32[144,128]{1,0:T(1,128)}', space=vmem, size = 0x12000, scoped, tag = 'internal scratch']
  #allocation2 [shape = 'f32[8,32]{1,0:T(8,128)}', space=vmem, size = 0x1000, scoped, tag = 'scratch operand']
  #allocation3 [shape = 'f32[8,1]{1,0:T(8,128)}', space=vmem, size = 0x1000, scoped, tag = 'scratch operand']
  #allocation4 [shape = 'f32[8,1]{1,0:T(8,128)}', space=vmem, size = 0x1000, scoped, tag = 'scratch operand']
  %s0 = inlined_call_operand.hbm [shape: f32[16,32], index: 0, kind: input, shape index: {}]
  %s1 = inlined_call_operand.hbm [shape: f32[16,32], index: 1, kind: input, shape index: {}]
  %s2 = inlined_call_operand.vmem [shape: f32[16,1], index: 2, kind: output, shape index: {}]
  %s3 = sld [smem:[#allocation0]]
  $region65: #{tpu_custom_call.1} parent=0
    _
  %s5 = ssub.s32 1, %s3
  %s6 = scalar_select 0, %s5, %s3
  $region1: #{tpu_custom_call.1} parent=0
    #allocation5 [shape = 'u8[8192]{0}', space=vmem, size = 0x2000, scoped, tag = 'input window, operand 0']
    #allocation6 [shape = 's32[2]{0}', space=sflag, size = 0x8, scoped, tag = 'scoped memory for tpu_custom_call.1']
    #allocation7 [shape = 'u8[8192]{0}', space=vmem, size = 0x2000, scoped, tag = 'input window, operand 1']
    #allocation8 [shape = 's32[2]{0}', space=sflag, size = 0x8, scoped, tag = 'scoped memory for tpu_custom_call.1']
    %7 = vsyncpa [#allocation6], 0
    %s8 = scalar_lea.sflag [#allocation6], 1
    %9 = vsyncpa %s8, 0
    %10 = vsyncpa [#allocation8], 0
    %s11 = scalar_lea.sflag [#allocation8], 1
    %12 = vsyncpa %s11, 0
    loop: start=0, step=1, limit=6
    $region2: #{tpu_custom_call.1} parent=1 // loop_pre_header
      _
    $region3: #{tpu_custom_call.1} parent=1 // loop_header
      %s14 = sphi 0, %s18
      %p15 = scmp.ge.s32.totalorder %s14, 6
      %s21 = sphi 0, %s33
      %s22 = sphi 0, %s29
      %s23 = sphi 0, %s21
      %s24 = sphi 0, %s22
      %s25 = sphi 0, %s23
      %s26 = sphi 0, %s24
      %s36 = sphi 0, %s38
      %s39 = sphi 0, %s36
      %s40 = sphi 0, %s39
      %s56 = sphi 0, %s40
      %s62 = sphi 0, %s64
      %s65 = sphi 0, %s62
      %s66 = sphi 0, %s65
      %s82 = sphi 0, %s66
      %s88 = sphi 0, %s90
      %s91 = sphi 0, %s88
      %s92 = sphi 0, %s91
      %s108 = sphi 0, %s92
    $region4: #{tpu_custom_call.1} parent=1 // loop_header_branch
      %17 = sbr.rel (%p15) target = $region8
    $region5: #{tpu_custom_call.1} parent=1 // loop_body
      %s19 = ssub.s32 %s14, 1
      %s20 = ssub.s32 %s14, 2
      %s27 = sadd.s32 1, %s22
      %p28 = scmp.ge.s32.totalorder %s27, 2
      %s29 = scalar_select %p28, 0, %s27
      %s30 = sadd.s32 1, %s21
      %s31 = scalar_select %p28, %s30, %s21
      %p32 = scmp.ge.s32.totalorder %s31, 2
      %s33 = scalar_select %p32, 0, %s31
      %s34 = ssub.s32 %s21, %s33
      %p35 = scmp.eq.s32.totalorder %s34, 0
      %s37 = sadd.s32 %s36, 1
      %s38 = scalar_select %p35, %s36, %s37
      %p41 = pneg %p35
      %p42 = scmp.eq.s32.totalorder %s14, 3
      %p43 = por %p41, %p42
      %p44 = scmp.ne.s32.totalorder %s36, %s39
      %p45 = scmp.eq.s32.totalorder %s14, 0
      %p46 = por %p44, %p45
      %p47 = scmp.ne.s32.totalorder %s36, %s39
      %p48 = scmp.eq.s32.totalorder %s19, 3
      %p49 = por %p47, %p48
      %p50 = scmp.ne.s32.totalorder %s39, %s40
      %p51 = scmp.eq.s32.totalorder %s19, 0
      %p52 = por %p50, %p51
      %p53 = scmp.ne.s32.totalorder %s39, %s40
      %p54 = scmp.eq.s32.totalorder %s20, 3
      %p55 = por %p53, %p54
      %p57 = scmp.ne.s32.totalorder %s40, %s56
      %p58 = scmp.eq.s32.totalorder %s20, 0
      %p59 = por %p57, %p58
      %s60 = ssub.s32 %s22, %s29
      %p61 = scmp.eq.s32.totalorder %s60, 0
      %s63 = sadd.s32 %s62, 1
      %s64 = scalar_select %p61, %s62, %s63
      %p67 = pneg %p61
      %p68 = scmp.eq.s32.totalorder %s14, 3
      %p69 = por %p67, %p68
      %p70 = scmp.ne.s32.totalorder %s62, %s65
      %p71 = scmp.eq.s32.totalorder %s14, 0
      %p72 = por %p70, %p71
      %p73 = scmp.ne.s32.totalorder %s62, %s65
      %p74 = scmp.eq.s32.totalorder %s19, 3
      %p75 = por %p73, %p74
      %p76 = scmp.ne.s32.totalorder %s65, %s66
      %p77 = scmp.eq.s32.totalorder %s19, 0
      %p78 = por %p76, %p77
      %p79 = scmp.ne.s32.totalorder %s65, %s66
      %p80 = scmp.eq.s32.totalorder %s20, 3
      %p81 = por %p79, %p80
      %p83 = scmp.ne.s32.totalorder %s66, %s82
      %p84 = scmp.eq.s32.totalorder %s20, 0
      %p85 = por %p83, %p84
      %s86 = ssub.s32 %s21, %s33
      %p87 = scmp.eq.s32.totalorder %s86, 0
      %s89 = sadd.s32 %s88, 1
      %s90 = scalar_select %p87, %s88, %s89
      %p93 = pneg %p87
      %p94 = scmp.eq.s32.totalorder %s14, 3
      %p95 = por %p93, %p94
      %p96 = scmp.ne.s32.totalorder %s88, %s91
      %p97 = scmp.eq.s32.totalorder %s14, 0
      %p98 = por %p96, %p97
      %p99 = scmp.ne.s32.totalorder %s88, %s91
      %p100 = scmp.eq.s32.totalorder %s19, 3
      %p101 = por %p99, %p100
      %p102 = scmp.ne.s32.totalorder %s91, %s92
      %p103 = scmp.eq.s32.totalorder %s19, 0
      %p104 = por %p102, %p103
      %p105 = scmp.ne.s32.totalorder %s91, %s92
      %p106 = scmp.eq.s32.totalorder %s20, 3
      %p107 = por %p105, %p106
      %p109 = scmp.ne.s32.totalorder %s92, %s108
      %p110 = scmp.eq.s32.totalorder %s20, 0
      %p111 = por %p109, %p110
      %p112 = scmp.le.s32.totalorder 1, %s14
      %p113 = scmp.lt.s32.totalorder %s14, 5
      %p114 = pnand %p112, %p113
      %p115 = pneg %p114
      // Predicated region
      $region9: #{tpu_custom_call.1} parent=5 // pred_check
        _
      $region10: #{tpu_custom_call.1} parent=5 // pred_check_branch
        %117 = sbr.rel (%p114) target = $region12
      $region11: #{tpu_custom_call.1} parent=5 // pred_region
        %s118 = ssub.s32 %s14, 1
      $region12: #{tpu_custom_call.1} parent=5 // pred_fallthru
        _
      %p119 = scmp.lt.s32.totalorder %s14, 4
      // Predicated region
      $region13: #{tpu_custom_call.1} parent=5 // pred_check
        %p120 = pneg %p119
      $region14: #{tpu_custom_call.1} parent=5 // pred_check_branch
        %122 = sbr.rel (%p120) target = $region16
      $region15: #{tpu_custom_call.1} parent=5 // pred_region
        // Predicated region
        $region17: #{tpu_custom_call.1} parent=15 // pred_check
          %p123 = pneg %p46
        $region18: #{tpu_custom_call.1} parent=15 // pred_check_branch
          %125 = sbr.rel (%p123) target = $region20
        $region19: #{tpu_custom_call.1} parent=15 // pred_region
          %s126 = sand.u32 %s36, 1
          %s127 = scalar_lea.sflag [#allocation6], %s126
          %s128 = sand.u32 %s36, 1
          %s129 = smul.addr %s128, 8
          %s130 = scalar_lea.vmem [#allocation5], %s129
          %s132 = ssub.s32 128, 128
          %133 = vsyncadd %s127, %s132
          %s134 = smul.addr %s21, 128
          %s135 = scalar_lea.hbm %s0, %s134
          %s137 = sshll.u32 %s130, 4
          %s138 = int_to_ptr.vmem [resolvable:$true] %s137
          %140 = dma.hbm_to_vmem [thread:$0]  %s135, 128, %s138, %s127
        $region20: #{tpu_custom_call.1} parent=15 // pred_fallthru
          _
        // Predicated region
        $region21: #{tpu_custom_call.1} parent=15 // pred_check
          %p141 = pneg %p72
        $region22: #{tpu_custom_call.1} parent=15 // pred_check_branch
          %143 = sbr.rel (%p141) target = $region24
        $region23: #{tpu_custom_call.1} parent=15 // pred_region
          %s144 = sand.u32 %s62, 1
          %s145 = scalar_lea.sflag [#allocation8], %s144
          %s146 = sand.u32 %s62, 1
          %s147 = smul.addr %s146, 8
          %s148 = scalar_lea.vmem [#allocation7], %s147
          %s150 = ssub.s32 128, 128
          %151 = vsyncadd %s145, %s150
          %s152 = smul.addr %s22, 128
          %s153 = scalar_lea.hbm %s1, %s152
          %s155 = sshll.u32 %s148, 4
          %s156 = int_to_ptr.vmem [resolvable:$true] %s155
          %158 = dma.hbm_to_vmem [thread:$0]  %s153, 128, %s156, %s145
        $region24: #{tpu_custom_call.1} parent=15 // pred_fallthru
          _
      $region16: #{tpu_custom_call.1} parent=5 // pred_fallthru
        _
      %p159 = scmp.le.s32.totalorder 1, %s14
      %p160 = scmp.lt.s32.totalorder %s14, 5
      %p161 = pnand %p159, %p160
      %p162 = pneg %p161
      // Predicated region
      $region25: #{tpu_custom_call.1} parent=5 // pred_check
        _
      $region26: #{tpu_custom_call.1} parent=5 // pred_check_branch
        %164 = sbr.rel (%p161) target = $region28
      $region27: #{tpu_custom_call.1} parent=5 // pred_region
        %s165 = ssub.s32 %s14, 1
        %s166 = sand.u32 %s39, 1
        %s167 = scalar_lea.sflag [#allocation6], %s166
        %s168 = sand.u32 %s39, 1
        %s169 = smul.addr %s168, 8
        %s170 = scalar_lea.vmem [#allocation5], %s169
        // Predicated region
        $region29: #{tpu_custom_call.1} parent=27 // pred_check
          %p171 = pneg %p52
        $region30: #{tpu_custom_call.1} parent=27 // pred_check_branch
          %173 = sbr.rel (%p171) target = $region32
        $region31: #{tpu_custom_call.1} parent=27 // pred_region
          %174 = dma.done %s167, 128
        $region32: #{tpu_custom_call.1} parent=27 // pred_fallthru
          _
        %s175 = sand.u32 %s65, 1
        %s176 = scalar_lea.sflag [#allocation8], %s175
        %s177 = sand.u32 %s65, 1
        %s178 = smul.addr %s177, 8
        %s179 = scalar_lea.vmem [#allocation7], %s178
        // Predicated region
        $region33: #{tpu_custom_call.1} parent=27 // pred_check
          %p180 = pneg %p78
        $region34: #{tpu_custom_call.1} parent=27 // pred_check_branch
          %182 = sbr.rel (%p180) target = $region36
        $region35: #{tpu_custom_call.1} parent=27 // pred_region
          %183 = dma.done %s176, 128
        $region36: #{tpu_custom_call.1} parent=27 // pred_fallthru
          _
        %s184 = sand.u32 %s39, 1
        %s185 = scalar_lea.sflag [#allocation6], %s184
        %s186 = sand.u32 %s39, 1
        %s187 = smul.addr %s186, 8
        %s188 = scalar_lea.vmem [#allocation5], %s187
        %p189 = pneg %p52
        %p190 = pneg %p49
        %s191 = sand.u32 %s65, 1
        %s192 = scalar_lea.sflag [#allocation8], %s191
        %s193 = sand.u32 %s65, 1
        %s194 = smul.addr %s193, 8
        %s195 = scalar_lea.vmem [#allocation7], %s194
        %p196 = pneg %p78
        %p197 = pneg %p75
        %p198 = pneg %p104
        %p199 = pneg %p101
        %p200 = scmp.lt.s32.totalorder %s23, 1
        %s201 = scalar_select %p200, %s23, 1
        %s202 = smul.addr %s201, 8
        %s203 = scalar_lea.vmem %s2, %s202
        %p204 = scmp.lt.s32.totalorder %s23, 1
        %s205 = scalar_select %p204, %s23, 1
        %s206 = smul.addr %s205, 8
        %s207 = scalar_lea.vmem %s2, %s206
        %p208 = scmp.eq.s32.totalorder %s24, 0
        // Predicated region
        $region37: #{tpu_custom_call.1} parent=27 // pred_check
          %p209 = pneg %p208
        $region38: #{tpu_custom_call.1} parent=27 // pred_check_branch
          %211 = sbr.rel (%p209) target = $region40
        $region39: #{tpu_custom_call.1} parent=27 // pred_region
          %v212 = vld [vmem:[%s170] sm:$0xff]
          %v213 = vmul.f32 %v212, %v212
          %vm214 = vcmask 261120
          %v215 = vsel %vm214, %v213, 0.0
          %216 = vadd.xlane.f32.xlu0 %v215
          %v217 = vpop.xlane.xlu0 %216
          %v218 = vmax.f32 %v217, 1e-16
          %v219 = vrsqrt.pop %v218
          %v220 = vmul.f32 %v212, %v219
          %221 = vst.msk [vmem:[#allocation2] sm:$0xff] %vm214, %v220
          %vm222 = vcmask 7168
          %223 = vst.msk [vmem:[#allocation3] sm:$0xff] %vm222, 0.0
          %224 = vst.msk [vmem:[#allocation4] sm:$0xff] %vm222, 0.0
        $region40: #{tpu_custom_call.1} parent=27 // pred_fallthru
          _
        %v225 = vld [vmem:[%s179] sm:$0xff]
        %v226 = vmul.f32 %v225, %v225
        %vm227 = vcmask 261120
        %v228 = vsel %vm227, %v226, 0.0
        %229 = vadd.xlane.f32.xlu0 %v228
        %v230 = vpop.xlane.xlu0 %229
        %v231 = vmax.f32 %v230, 1e-16
        %v232 = vrsqrt.pop %v231
        %v233 = vmul.f32 %v225, %v232
        %v234 = vld [vmem:[#allocation2] sm:$0xff]
        %v236 = vsel %vm227, %v234, 0
        %v239 = vsel %vm227, %v233, 0
        %241 = vmatprep.subr.mxu0 0.0
        %242 = vmatpush1.xpose.msra.mxu0 %v239
        %243 = vmatprep.subr.mxu0 0.0
        %244 = vmatpush1.xpose.msra.mxu0 0.0
        %245 = vmatprep.subr.mxu0 0.0
        %246 = vmatpush1.xpose.msra.mxu0 0.0
        %247 = vmatprep.subr.mxu0 0.0
        %248 = vmatpush1.xpose.msra.mxu0 0.0
        %249 = vmatprep.subr.mxu0 0.0
        %250 = vmatpush1.xpose.msra.mxu0 0.0
        %251 = vmatprep.subr.mxu0 0.0
        %252 = vmatpush1.xpose.msra.mxu0 0.0
        %253 = vmatprep.subr.mxu0 0.0
        %254 = vmatpush1.xpose.msra.mxu0 0.0
        %255 = vmatprep.subr.mxu0 0.0
        %256 = vmatpush1.xpose.msra.mxu0 0.0
        %257 = vmatprep.subr.mxu0 0.0
        %258 = vmatpush1.xpose.msra.mxu0 0.0
        %259 = vmatprep.subr.mxu0 0.0
        %260 = vmatpush1.xpose.msra.mxu0 0.0
        %261 = vmatprep.subr.mxu0 0.0
        %262 = vmatpush1.xpose.msra.mxu0 0.0
        %263 = vmatprep.subr.mxu0 0.0
        %264 = vmatpush1.xpose.msra.mxu0 0.0
        %265 = vmatprep.subr.mxu0 0.0
        %266 = vmatpush1.xpose.msra.mxu0 0.0
        %267 = vmatprep.subr.mxu0 0.0
        %268 = vmatpush1.xpose.msra.mxu0 0.0
        %269 = vmatprep.subr.mxu0 0.0
        %270 = vmatpush1.xpose.msra.mxu0 0.0
        %271 = vmatprep.subr.mxu0 0.0
        %272 = vmatpush1.xpose.msra.mxu0 0.0
        %273 = vmatprep.subr.mxu0 0.0
        %274 = vmatpush1.xpose.msra.mxu0 0.0
        %275 = vmatprep.subr.mxu0 0.0
        %276 = vmatpush1.xpose.msra.mxu0 0.0
        %277 = vmatprep.subr.mxu0 0.0
        %278 = vmatpush1.xpose.msra.mxu0 0.0
        %279 = vmatprep.subr.mxu0 0.0
        %280 = vmatpush1.xpose.msra.mxu0 0.0
        %281 = vmatprep.subr.mxu0 0.0
        %282 = vmatpush1.xpose.msra.mxu0 0.0
        %283 = vmatprep.subr.mxu0 0.0
        %284 = vmatpush1.xpose.msra.mxu0 0.0
        %285 = vmatprep.subr.mxu0 0.0
        %286 = vmatpush1.xpose.msra.mxu0 0.0
        %287 = vmatprep.subr.mxu0 0.0
        %288 = vmatpush1.xpose.msra.mxu0 0.0
        %289 = vmatprep.subr.mxu0 0.0
        %290 = vmatpush1.xpose.msra.mxu0 0.0
        %291 = vmatprep.subr.mxu0 0.0
        %292 = vmatpush1.xpose.msra.mxu0 0.0
        %293 = vmatprep.subr.mxu0 0.0
        %294 = vmatpush1.xpose.msra.mxu0 0.0
        %295 = vmatprep.subr.mxu0 0.0
        %296 = vmatpush1.xpose.msra.mxu0 0.0
        %297 = vmatprep.subr.mxu0 0.0
        %298 = vmatpush1.xpose.msra.mxu0 0.0
        %299 = vmatprep.subr.mxu0 0.0
        %300 = vmatpush1.xpose.msra.mxu0 0.0
        %301 = vmatprep.subr.mxu0 0.0
        %302 = vmatpush1.xpose.msra.mxu0 0.0
        %303 = vmatprep.subr.mxu0 0.0
        %304 = vmatpush1.xpose.msra.mxu0 0.0
        %305 = vmatprep.mubr.f32.mxu0 0.0
        %306 = vmatmul.mubr.f32.gmra.mrb[0].mxu0 %v236
        %v307 = vpop.f32.mrb[0].mxu0
        %v308 = vadd.f32 0.0, %v307
        %v309 = vpop.f32.mrb[0].mxu0
        %310 = vdwg.mxu0
        %v311 = vmul.f32 %v308, 2.0
        %v312 = vmul.f32 %v311, 1.442695
        %v313 = vpow.pop %v312
        %v314 = vld [vmem:[#allocation3] sm:$0xff]
        %vm315 = vcmask 64512
        %v316 = vsel %vm315, %v313, 0.0
        %317 = vadd.xlane.f32.xlu0 %v316
        %v318 = vpop.xlane.xlu0 %317
        %v319 = vadd.f32 %v314, %v318
        %vm320 = vcmask 7168
        %321 = vst.msk [vmem:[#allocation3] sm:$0xff] %vm320, %v319
        %p322 = scmp.eq.s32.totalorder %s24, %s23
        %s323 = sadd.s32 %s23, 1
        %p324 = scmp.lt.s32.totalorder %s323, 0
        %s325 = ssub.s32 0, %s323
        %s326 = scalar_select %p324, %s325, %s323
        %s327 = sand.u32 %s326, 1
        %s328 = ssub.s32 0, %s327
        %s329 = scalar_select %p324, %s328, %s327
        %p330 = scmp.ne.s32.totalorder %s329, 0
        %p331 = scmp.lt.s32.totalorder %s329, 0
        %p332 = pnand %p331, %p330
        %p333 = pneg %p332
        %s334 = sadd.s32 %s329, 2
        %s335 = scalar_select %p333, %s334, %s329
        %p336 = scmp.eq.s32.totalorder %s24, %s335
        %p337 = por %p322, %p336
        // Predicated region
        $region41: #{tpu_custom_call.1} parent=27 // pred_check
          %p338 = pneg %p337
        $region42: #{tpu_custom_call.1} parent=27 // pred_check_branch
          %340 = sbr.rel (%p338) target = $region44
        $region43: #{tpu_custom_call.1} parent=27 // pred_region
          %v341 = vmul.f32 %v234, %v233
          %v342 = vsel %vm227, %v341, 0.0
          %343 = vadd.xlane.f32.xlu0 %v342
          %v344 = vpop.xlane.xlu0 %343
          %v345 = vmul.f32 %v344, 2.0
          %v346 = vmul.f32 %v345, 1.442695
          %v347 = vpow.pop %v346
          %v348 = vld [vmem:[#allocation3] sm:$0xff]
          %v349 = vsub.f32 %v348, %v347
          %350 = vst.msk [vmem:[#allocation3] sm:$0xff] %vm320, %v349
          // Predicated region
          $region45: #{tpu_custom_call.1} parent=43 // pred_check
            %p351 = pneg %p336
          $region46: #{tpu_custom_call.1} parent=43 // pred_check_branch
            %353 = sbr.rel (%p351) target = $region48
          $region47: #{tpu_custom_call.1} parent=43 // pred_region
            %v354 = vld [vmem:[#allocation4] sm:$0xff]
            %v355 = vadd.f32 %v354, %v347
            %356 = vst.msk [vmem:[#allocation4] sm:$0xff] %vm320, %v355
          $region48: #{tpu_custom_call.1} parent=43 // pred_fallthru
            _
        $region44: #{tpu_custom_call.1} parent=27 // pred_fallthru
          _
        %p357 = scmp.eq.s32.totalorder %s24, 1
        // Predicated region
        $region49: #{tpu_custom_call.1} parent=27 // pred_check
          %p358 = pneg %p357
        $region50: #{tpu_custom_call.1} parent=27 // pred_check_branch
          %360 = sbr.rel (%p358) target = $region52
        $region51: #{tpu_custom_call.1} parent=27 // pred_region
          %v361 = vld [vmem:[#allocation4] sm:$0xff]
          %v362 = vld [vmem:[#allocation3] sm:$0xff]
          %v363 = vmul.f32 %v361, -1.4
          %v364 = vadd.f32 %v363, %v362
          %v365 = vrcp.pop 0.9
          %v366 = vmul.f32 %v364, %v365
          %v367 = vmax.f32 %v366, 1.894694
          %v368 = vadd.f32 %v361, %v367
          %v369 = vrcp.pop %v368
          %v370 = vmul.f32 %v361, %v369
          %v371 = vlog2.pop %v370
          %v372 = vmul.f32 %v371, 0.6931472
          %v373 = vsub.f32 0.0, %v372
          %374 = vst.msk [vmem:[%s207] sm:$0xff] %vm320, %v373
        $region52: #{tpu_custom_call.1} parent=27 // pred_fallthru
          _
        %p375 = scmp.lt.s32.totalorder %s23, 1
        %s376 = scalar_select %p375, %s23, 1
        %s377 = smul.addr %s376, 8
        %s378 = scalar_lea.vmem %s2, %s377
        // Predicated region
        $region53: #{tpu_custom_call.1} parent=27 // pred_check
          %p379 = pneg %p101
        $region54: #{tpu_custom_call.1} parent=27 // pred_check_branch
          %381 = sbr.rel (%p379) target = $region56
        $region55: #{tpu_custom_call.1} parent=27 // pred_region
          _
        $region56: #{tpu_custom_call.1} parent=27 // pred_fallthru
          _
      $region28: #{tpu_custom_call.1} parent=5 // pred_fallthru
        _
      %p382 = scmp.le.s32.totalorder 2, %s14
      // Predicated region
      $region57: #{tpu_custom_call.1} parent=5 // pred_check
        %p383 = pneg %p382
      $region58: #{tpu_custom_call.1} parent=5 // pred_check_branch
        %385 = sbr.rel (%p383) target = $region60
      $region59: #{tpu_custom_call.1} parent=5 // pred_region
        %s386 = ssub.s32 %s14, 2
        // Predicated region
        $region61: #{tpu_custom_call.1} parent=59 // pred_check
          %p387 = pneg %p107
        $region62: #{tpu_custom_call.1} parent=59 // pred_check_branch
          %389 = sbr.rel (%p387) target = $region64
        $region63: #{tpu_custom_call.1} parent=59 // pred_region
          %p390 = scmp.lt.s32.totalorder %s25, 1
          %s391 = scalar_select %p390, %s25, 1
          %s392 = smul.addr %s391, 8
          %s393 = scalar_lea.vmem %s2, %s392
        $region64: #{tpu_custom_call.1} parent=59 // pred_fallthru
          _
      $region60: #{tpu_custom_call.1} parent=5 // pred_fallthru
        _
    $region6: #{tpu_custom_call.1} parent=1 // loop_footer
      %s18 = sadd.s32 1, %s14
    $region7: #{tpu_custom_call.1} parent=1 // loop_footer_branch
      %13 = sbr.rel target = $region3
    $region8: #{tpu_custom_call.1} parent=1 // loop_exit
      _
    %394 = vsyncpa [#allocation6], 1
    %s395 = scalar_lea.sflag [#allocation6], 1
    %396 = vsyncpa %s395, 1
    %397 = vsyncpa [#allocation8], 1
    %s398 = scalar_lea.sflag [#allocation8], 1
    %399 = vsyncpa %s398, 1

</llo_original>
